<compile_context>
chip_gen: v7x
topology: tpu7x:2x2x1
jax: 0.10.0
libtpu: 0.0.40
codegen_flags: <defaults>
</compile_context>

<pallas_src>
from functools import partial

import numpy as np
import jax
import jax.numpy as jnp
from jax import lax
from jax.experimental import pallas as pl
from jax.experimental.pallas import tpu as pltpu


# ---------------- in-kernel helpers (operate on jnp values) ----------------

def _roll_lanes(x, s):
    # result[:, p] = x[:, (p - s) % L]  — static lane rotation on the XLU.
    L = x.shape[-1]
    return pltpu.roll(x, shift=s % L, axis=1)


def _taps_w(x, wpos, width, stride):
    # Taps (x[p-stride], x[p], x[p+stride]) along W, zero-padded at the W
    # edges, stacked on the contraction (sublane) axis -> (3*C, L).
    xm = jnp.where(wpos < stride, 0.0, _roll_lanes(x, stride))
    xp = jnp.where(wpos >= width - stride, 0.0, _roll_lanes(x, -stride))
    return jnp.concatenate([xm, x, xp], axis=0)


def _taps_h(x, impos, height, width, stride):
    # Taps along H: neighbors are +-stride*width lanes, zero-padded at the H
    # edges.  The per-image mask also kills wrap-around across image/batch
    # boundaries (impos resets every H*W lanes).
    s = stride * width
    xm = jnp.where(impos < s, 0.0, _roll_lanes(x, s))
    xp = jnp.where(impos >= (height - stride) * width, 0.0, _roll_lanes(x, -s))
    return jnp.concatenate([xm, x, xp], axis=0)


# ------------------------------- kernel -------------------------------------

def convblock_kernel(x_ref, w1_ref, b1_ref, w2_ref, b2_ref,
                     w3_ref, b3_ref, w4_ref, b4_ref, o_ref, *, height, width):
    L = x_ref.shape[-1]
    # Boundary masks hoisted: the lane-position iota is computed once per step.
    lane = lax.broadcasted_iota(jnp.int32, (1, L), 1)
    wpos = lane % width
    impos = lane % (height * width)

    def conv3(taps, w_ref, b_ref):
        # One fused-K MXU matmul per conv: (Cout, 3C) @ (3C, L) + bias.
        return jnp.dot(w_ref[...], taps,
                       preferred_element_type=jnp.float32) + b_ref[...]

    # NOTE: MXU operands kept in f32 for exactness; on v6e/v7x casting the dot
    # operands to bf16 (f32 accumulation) adds throughput if tolerance allows.
    x = x_ref[...].astype(jnp.float32)
    y = conv3(_taps_w(x, wpos, width, 1), w1_ref, b1_ref)            # Conv (1,3)
    y = conv3(_taps_h(y, impos, height, width, 1), w2_ref, b2_ref)   # Conv (3,1)
    # Dropout: identity at inference.
    y = jnp.maximum(y, 0.0)                                          # ReLU
    # MaxPool2d(2,2): 2x2 max; valid values land on even-(h, w) anchor lanes.
    y = jnp.maximum(y, _roll_lanes(y, -1))
    y = jnp.maximum(y, _roll_lanes(y, -width))
    # Second conv pair on the dilated (anchor) grid: stride-2 tap shifts with
    # pooled-grid boundary masks; anchor lanes only ever read anchor lanes.
    y = conv3(_taps_h(y, impos, height, width, 2), w3_ref, b3_ref)   # Conv (3,1)
    y = conv3(_taps_w(y, wpos, width, 2), w4_ref, b4_ref)            # Conv (1,3)
    # Dropout: identity at inference.
    y = jnp.maximum(y, 0.0)                                          # ReLU
    o_ref[...] = y.astype(o_ref.dtype)


# ------------------------------- wrapper -------------------------------------

def convblock_forward(x_nchw, params):
    """ConvBlock forward.  x_nchw: (N, Cin, H, W) -> (N, Cout, H//2, W//2)."""
    w1, b1, w2, b2, w3, b3, w4, b4 = params                 # OIHW weights, 1D biases
    N, Cin, H, W = x_nchw.shape
    Cout = w1.shape[0]
    assert H >= 2 and W >= 2                                 # module asserts
    # TODO(synk): odd H/W (MaxPool2d floor semantics) not supported.
    assert H % 2 == 0 and W % 2 == 0
    HW = H * W

    # Channel-major, spatially flattened activations: (Cin, N*H*W); the
    # flattened (n, h, w) index sits on the lane axis (lane-dense).
    x_cl = jnp.transpose(x_nchw, (1, 0, 2, 3)).reshape(Cin, N * HW)

    # Repack each conv's weights as a single (Cout, 3*Cin) matrix whose
    # contraction layout matches the tap-stacked activations (k-major, ci-minor).
    def pack_w(w3d):                                        # (Cout, Cin, 3) -> (Cout, 3*Cin)
        return jnp.transpose(w3d, (0, 2, 1)).reshape(w3d.shape[0], -1)

    w1m = pack_w(w1[:, :, 0, :])
    w2m = pack_w(w2[:, :, :, 0])
    w3m = pack_w(w3[:, :, :, 0])
    w4m = pack_w(w4[:, :, 0, :])
    b1m, b2m, b3m, b4m = (b.reshape(-1, 1) for b in (b1, b2, b3, b4))

    # One image per grid step when H*W is lane-aligned (keeps the grid a
    # multiple of the batch so both v7x TensorCores get work); otherwise fold
    # the whole batch into one full-extent block (exempt from the 128 rule).
    nb = 1 if HW % 128 == 0 else N
    grid = (N // nb,)
    Lb = nb * HW

    const = lambda i: (0, 0)
    out_dil = pl.pallas_call(
        partial(convblock_kernel, height=H, width=W),
        out_shape=jax.ShapeDtypeStruct((Cout, N * HW), x_nchw.dtype),
        grid_spec=pltpu.PrefetchScalarGridSpec(
            num_scalar_prefetch=0,
            grid=grid,
            in_specs=[
                pl.BlockSpec((Cin, Lb), lambda i: (0, i)),
                pl.BlockSpec((Cout, 3 * Cin), const),
                pl.BlockSpec((Cout, 1), const),
                pl.BlockSpec((Cout, 3 * Cout), const),
                pl.BlockSpec((Cout, 1), const),
                pl.BlockSpec((Cout, 3 * Cout), const),
                pl.BlockSpec((Cout, 1), const),
                pl.BlockSpec((Cout, 3 * Cout), const),
                pl.BlockSpec((Cout, 1), const),
            ],
            out_specs=pl.BlockSpec((Cout, Lb), lambda i: (0, i)),
        ),
        compiler_params=pltpu.CompilerParams(
            dimension_semantics=("parallel",)),
    )(x_cl, w1m, b1m, w2m, b2m, w3m, b3m, w4m, b4m)

    # Extract the pooled anchors (even h, even w) and return NCHW.
    out = out_dil.reshape(Cout, N, H, W)[:, :, ::2, ::2]
    return jnp.transpose(out, (1, 0, 2, 3))


# ------------------------- pure-JAX reference --------------------------------

def ref_forward(x, params):
    w1, b1, w2, b2, w3, b3, w4, b4 = params
    dn = ("NCHW", "OIHW", "NCHW")

    def conv(y, w, b, pad):
        y = lax.conv_general_dilated(y, w, (1, 1), pad, dimension_numbers=dn)
        return y + b[None, :, None, None]

    y = conv(x, w1, b1, ((0, 0), (1, 1)))
    y = conv(y, w2, b2, ((1, 1), (0, 0)))
    y = jnp.maximum(y, 0.0)
    y = lax.reduce_window(y, -jnp.inf, lax.max, (1, 1, 2, 2), (1, 1, 2, 2), "VALID")
    y = conv(y, w3, b3, ((1, 1), (0, 0)))
    y = conv(y, w4, b4, ((0, 0), (1, 1)))
    return jnp.maximum(y, 0.0)


# --------------------------------- main --------------------------------------

if __name__ == "__main__":
    N, Cin, Cout, H, W = 2, 4, 8, 16, 16
    dropout_rate = 0.1  # identity at inference time

    key = jax.random.PRNGKey(0)
    keys = jax.random.split(key, 9)

    def uinit(k, shape, fan_in):
        bound = 1.0 / np.sqrt(fan_in)
        return jax.random.uniform(k, shape, jnp.float32, -bound, bound)

    w1 = uinit(keys[0], (Cout, Cin, 1, 3), Cin * 3)
    b1 = uinit(keys[1], (Cout,), Cin * 3)
    w2 = uinit(keys[2], (Cout, Cout, 3, 1), Cout * 3)
    b2 = uinit(keys[3], (Cout,), Cout * 3)
    w3 = uinit(keys[4], (Cout, Cout, 3, 1), Cout * 3)
    b3 = uinit(keys[5], (Cout,), Cout * 3)
    w4 = uinit(keys[6], (Cout, Cout, 1, 3), Cout * 3)
    b4 = uinit(keys[7], (Cout,), Cout * 3)
    x = jax.random.normal(keys[8], (N, Cin, H, W), jnp.float32)

    params = (w1, b1, w2, b2, w3, b3, w4, b4)

    fwd = jax.jit(convblock_forward)
    out = fwd(x, params)
    out = jax.block_until_ready(out)

    ref = ref_forward(x, params)
    np.testing.assert_allclose(np.asarray(out), np.asarray(ref),
                               rtol=1e-4, atol=1e-4)
    print("KERNEL_OK")
</pallas_src>

<mosaic_0001>
module attributes {stable_mosaic.version = 11 : i64} {
  func.func @convblock_kernel(%arg0: i32, %arg1: memref<4x256xf32, #tpu.memory_space<vmem>>, %arg2: memref<8x12xf32, #tpu.memory_space<vmem>>, %arg3: memref<8x1xf32, #tpu.memory_space<vmem>>, %arg4: memref<8x24xf32, #tpu.memory_space<vmem>>, %arg5: memref<8x1xf32, #tpu.memory_space<vmem>>, %arg6: memref<8x24xf32, #tpu.memory_space<vmem>>, %arg7: memref<8x1xf32, #tpu.memory_space<vmem>>, %arg8: memref<8x24xf32, #tpu.memory_space<vmem>>, %arg9: memref<8x1xf32, #tpu.memory_space<vmem>>, %arg10: memref<8x256xf32, #tpu.memory_space<vmem>>) attributes {dimension_semantics = [#tpu.dimension_semantics<parallel>], iteration_bounds = array<i64: 2>, scalar_prefetch = 0 : i64, scratch_operands = 0 : i64, tpu.core_type = #tpu.core_type<tc>, window_params = [{transform_indices = @transform_0, window_bounds = array<i64: 4, 256>}, {pipeline_mode = #tpu.pipeline_mode<synchronous>, transform_indices = @transform_1, window_bounds = array<i64: 8, 12>}, {pipeline_mode = #tpu.pipeline_mode<synchronous>, transform_indices = @transform_2, window_bounds = array<i64: 8, 1>}, {pipeline_mode = #tpu.pipeline_mode<synchronous>, transform_indices = @transform_3, window_bounds = array<i64: 8, 24>}, {pipeline_mode = #tpu.pipeline_mode<synchronous>, transform_indices = @transform_4, window_bounds = array<i64: 8, 1>}, {pipeline_mode = #tpu.pipeline_mode<synchronous>, transform_indices = @transform_5, window_bounds = array<i64: 8, 24>}, {pipeline_mode = #tpu.pipeline_mode<synchronous>, transform_indices = @transform_6, window_bounds = array<i64: 8, 1>}, {pipeline_mode = #tpu.pipeline_mode<synchronous>, transform_indices = @transform_7, window_bounds = array<i64: 8, 24>}, {pipeline_mode = #tpu.pipeline_mode<synchronous>, transform_indices = @transform_8, window_bounds = array<i64: 8, 1>}, {transform_indices = @transform_9, window_bounds = array<i64: 8, 256>}]} {
    %0 = tpu.iota {dimensions = array<i32: 1>} : vector<1x256xi32>
    %c16_i32 = arith.constant 16 : i32
    %c0_i32 = arith.constant 0 : i32
    %1 = arith.cmpi eq, %c16_i32, %c0_i32 : i32
    %c1_i32 = arith.constant 1 : i32
    %2 = arith.select %1, %c1_i32, %c16_i32 : i32
    %3 = vector.broadcast %2 : i32 to vector<1x256xi32>
    %4 = arith.remsi %0, %3 : vector<1x256xi32>
    %c0_i32_0 = arith.constant 0 : i32
    %5 = vector.broadcast %c0_i32_0 : i32 to vector<1x256xi32>
    %6 = arith.cmpi ne, %4, %5 : vector<1x256xi32>
    %c0_i32_1 = arith.constant 0 : i32
    %7 = vector.broadcast %c0_i32_1 : i32 to vector<1x256xi32>
    %8 = arith.cmpi slt, %4, %7 : vector<1x256xi32>
    %c0_i32_2 = arith.constant 0 : i32
    %9 = arith.cmpi slt, %2, %c0_i32_2 : i32
    %10 = vector.broadcast %9 : i1 to vector<1x256xi1>
    %11 = vector.broadcast %10 : vector<1x256xi1> to vector<1x256xi1>
    %12 = arith.xori %8, %11 : vector<1x256xi1>
    %13 = arith.andi %12, %6 : vector<1x256xi1>
    %14 = vector.broadcast %2 : i32 to vector<1x256xi32>
    %15 = arith.addi %4, %14 : vector<1x256xi32>
    %16 = arith.select %13, %15, %4 : vector<1x256xi1>, vector<1x256xi32>
    %c256_i32 = arith.constant 256 : i32
    %c0_i32_3 = arith.constant 0 : i32
    %17 = arith.cmpi eq, %c256_i32, %c0_i32_3 : i32
    %c1_i32_4 = arith.constant 1 : i32
    %18 = arith.select %17, %c1_i32_4, %c256_i32 : i32
    %19 = vector.broadcast %18 : i32 to vector<1x256xi32>
    %20 = arith.remsi %0, %19 : vector<1x256xi32>
    %c0_i32_5 = arith.constant 0 : i32
    %21 = vector.broadcast %c0_i32_5 : i32 to vector<1x256xi32>
    %22 = arith.cmpi ne, %20, %21 : vector<1x256xi32>
    %c0_i32_6 = arith.constant 0 : i32
    %23 = vector.broadcast %c0_i32_6 : i32 to vector<1x256xi32>
    %24 = arith.cmpi slt, %20, %23 : vector<1x256xi32>
    %c0_i32_7 = arith.constant 0 : i32
    %25 = arith.cmpi slt, %18, %c0_i32_7 : i32
    %26 = vector.broadcast %25 : i1 to vector<1x256xi1>
    %27 = vector.broadcast %26 : vector<1x256xi1> to vector<1x256xi1>
    %28 = arith.xori %24, %27 : vector<1x256xi1>
    %29 = arith.andi %28, %22 : vector<1x256xi1>
    %30 = vector.broadcast %18 : i32 to vector<1x256xi32>
    %31 = arith.addi %20, %30 : vector<1x256xi32>
    %32 = arith.select %29, %31, %20 : vector<1x256xi1>, vector<1x256xi32>
    %c0 = arith.constant 0 : index
    %c0_8 = arith.constant 0 : index
    %33 = vector.load %arg1[%c0, %c0_8] : memref<4x256xf32, #tpu.memory_space<vmem>>, vector<4x256xf32>
    %c1_i32_9 = arith.constant 1 : i32
    %34 = vector.broadcast %c1_i32_9 : i32 to vector<1x256xi32>
    %35 = arith.cmpi slt, %16, %34 : vector<1x256xi32>
    %c1_i32_10 = arith.constant 1 : i32
    %36 = tpu.dynamic_rotate %33 by %c1_i32_10 dim 1 : vector<4x256xf32>, i32 -> vector<4x256xf32>
    %cst = arith.constant 0.000000e+00 : f32
    %37 = vector.shape_cast %35 : vector<1x256xi1> to vector<1x256xi1>
    %38 = vector.broadcast %37 : vector<1x256xi1> to vector<4x256xi1>
    %39 = vector.broadcast %cst : f32 to vector<4x256xf32>
    %40 = arith.select %38, %39, %36 : vector<4x256xi1>, vector<4x256xf32>
    %c15_i32 = arith.constant 15 : i32
    %41 = vector.broadcast %c15_i32 : i32 to vector<1x256xi32>
    %42 = arith.cmpi sge, %16, %41 : vector<1x256xi32>
    %c255_i32 = arith.constant 255 : i32
    %43 = tpu.dynamic_rotate %33 by %c255_i32 dim 1 : vector<4x256xf32>, i32 -> vector<4x256xf32>
    %cst_11 = arith.constant 0.000000e+00 : f32
    %44 = vector.shape_cast %42 : vector<1x256xi1> to vector<1x256xi1>
    %45 = vector.broadcast %44 : vector<1x256xi1> to vector<4x256xi1>
    %46 = vector.broadcast %cst_11 : f32 to vector<4x256xf32>
    %47 = arith.select %45, %46, %43 : vector<4x256xi1>, vector<4x256xf32>
    %48 = tpu.concatenate %40, %33, %47 in 0 : vector<4x256xf32>, vector<4x256xf32>, vector<4x256xf32> -> vector<12x256xf32>
    %c0_12 = arith.constant 0 : index
    %c0_13 = arith.constant 0 : index
    %49 = vector.load %arg2[%c0_12, %c0_13] : memref<8x12xf32, #tpu.memory_space<vmem>>, vector<8x12xf32>
    %cst_14 = arith.constant dense<0.000000e+00> : vector<8x256xf32>
    %50 = tpu.matmul %49, %48, %cst_14 {dimension_numbers = #tpu.dot_dimension_numbers<[1], [0], [0], [1], [0, 0, 1, 1], [], []>} : vector<8x12xf32>, vector<12x256xf32>, vector<8x256xf32> -> vector<8x256xf32>
    %c0_15 = arith.constant 0 : index
    %c0_16 = arith.constant 0 : index
    %51 = vector.load %arg3[%c0_15, %c0_16] : memref<8x1xf32, #tpu.memory_space<vmem>>, vector<8x1xf32>
    %52 = vector.broadcast %51 : vector<8x1xf32> to vector<8x256xf32>
    %53 = arith.addf %50, %52 : vector<8x256xf32>
    %c16_i32_17 = arith.constant 16 : i32
    %54 = vector.broadcast %c16_i32_17 : i32 to vector<1x256xi32>
    %55 = arith.cmpi slt, %32, %54 : vector<1x256xi32>
    %c16_i32_18 = arith.constant 16 : i32
    %56 = tpu.dynamic_rotate %53 by %c16_i32_18 dim 1 : vector<8x256xf32>, i32 -> vector<8x256xf32>
    %cst_19 = arith.constant 0.000000e+00 : f32
    %57 = vector.shape_cast %55 : vector<1x256xi1> to vector<1x256xi1>
    %58 = vector.broadcast %57 : vector<1x256xi1> to vector<8x256xi1>
    %59 = vector.broadcast %cst_19 : f32 to vector<8x256xf32>
    %60 = arith.select %58, %59, %56 : vector<8x256xi1>, vector<8x256xf32>
    %c240_i32 = arith.constant 240 : i32
    %61 = vector.broadcast %c240_i32 : i32 to vector<1x256xi32>
    %62 = arith.cmpi sge, %32, %61 : vector<1x256xi32>
    %c240_i32_20 = arith.constant 240 : i32
    %63 = tpu.dynamic_rotate %53 by %c240_i32_20 dim 1 : vector<8x256xf32>, i32 -> vector<8x256xf32>
    %cst_21 = arith.constant 0.000000e+00 : f32
    %64 = vector.shape_cast %62 : vector<1x256xi1> to vector<1x256xi1>
    %65 = vector.broadcast %64 : vector<1x256xi1> to vector<8x256xi1>
    %66 = vector.broadcast %cst_21 : f32 to vector<8x256xf32>
    %67 = arith.select %65, %66, %63 : vector<8x256xi1>, vector<8x256xf32>
    %68 = tpu.concatenate %60, %53, %67 in 0 : vector<8x256xf32>, vector<8x256xf32>, vector<8x256xf32> -> vector<24x256xf32>
    %c0_22 = arith.constant 0 : index
    %c0_23 = arith.constant 0 : index
    %69 = vector.load %arg4[%c0_22, %c0_23] : memref<8x24xf32, #tpu.memory_space<vmem>>, vector<8x24xf32>
    %cst_24 = arith.constant dense<0.000000e+00> : vector<8x256xf32>
    %70 = tpu.matmul %69, %68, %cst_24 {dimension_numbers = #tpu.dot_dimension_numbers<[1], [0], [0], [1], [0, 0, 1, 1], [], []>} : vector<8x24xf32>, vector<24x256xf32>, vector<8x256xf32> -> vector<8x256xf32>
    %c0_25 = arith.constant 0 : index
    %c0_26 = arith.constant 0 : index
    %71 = vector.load %arg5[%c0_25, %c0_26] : memref<8x1xf32, #tpu.memory_space<vmem>>, vector<8x1xf32>
    %72 = vector.broadcast %71 : vector<8x1xf32> to vector<8x256xf32>
    %73 = arith.addf %70, %72 : vector<8x256xf32>
    %cst_27 = arith.constant 0.000000e+00 : f32
    %74 = vector.broadcast %cst_27 : f32 to vector<8x256xf32>
    %75 = arith.maximumf %73, %74 : vector<8x256xf32>
    %c255_i32_28 = arith.constant 255 : i32
    %76 = tpu.dynamic_rotate %75 by %c255_i32_28 dim 1 : vector<8x256xf32>, i32 -> vector<8x256xf32>
    %77 = arith.maximumf %75, %76 : vector<8x256xf32>
    %c240_i32_29 = arith.constant 240 : i32
    %78 = tpu.dynamic_rotate %77 by %c240_i32_29 dim 1 : vector<8x256xf32>, i32 -> vector<8x256xf32>
    %79 = arith.maximumf %77, %78 : vector<8x256xf32>
    %c32_i32 = arith.constant 32 : i32
    %80 = vector.broadcast %c32_i32 : i32 to vector<1x256xi32>
    %81 = arith.cmpi slt, %32, %80 : vector<1x256xi32>
    %c32_i32_30 = arith.constant 32 : i32
    %82 = tpu.dynamic_rotate %79 by %c32_i32_30 dim 1 : vector<8x256xf32>, i32 -> vector<8x256xf32>
    %cst_31 = arith.constant 0.000000e+00 : f32
    %83 = vector.shape_cast %81 : vector<1x256xi1> to vector<1x256xi1>
    %84 = vector.broadcast %83 : vector<1x256xi1> to vector<8x256xi1>
    %85 = vector.broadcast %cst_31 : f32 to vector<8x256xf32>
    %86 = arith.select %84, %85, %82 : vector<8x256xi1>, vector<8x256xf32>
    %c224_i32 = arith.constant 224 : i32
    %87 = vector.broadcast %c224_i32 : i32 to vector<1x256xi32>
    %88 = arith.cmpi sge, %32, %87 : vector<1x256xi32>
    %c224_i32_32 = arith.constant 224 : i32
    %89 = tpu.dynamic_rotate %79 by %c224_i32_32 dim 1 : vector<8x256xf32>, i32 -> vector<8x256xf32>
    %cst_33 = arith.constant 0.000000e+00 : f32
    %90 = vector.shape_cast %88 : vector<1x256xi1> to vector<1x256xi1>
    %91 = vector.broadcast %90 : vector<1x256xi1> to vector<8x256xi1>
    %92 = vector.broadcast %cst_33 : f32 to vector<8x256xf32>
    %93 = arith.select %91, %92, %89 : vector<8x256xi1>, vector<8x256xf32>
    %94 = tpu.concatenate %86, %79, %93 in 0 : vector<8x256xf32>, vector<8x256xf32>, vector<8x256xf32> -> vector<24x256xf32>
    %c0_34 = arith.constant 0 : index
    %c0_35 = arith.constant 0 : index
    %95 = vector.load %arg6[%c0_34, %c0_35] : memref<8x24xf32, #tpu.memory_space<vmem>>, vector<8x24xf32>
    %cst_36 = arith.constant dense<0.000000e+00> : vector<8x256xf32>
    %96 = tpu.matmul %95, %94, %cst_36 {dimension_numbers = #tpu.dot_dimension_numbers<[1], [0], [0], [1], [0, 0, 1, 1], [], []>} : vector<8x24xf32>, vector<24x256xf32>, vector<8x256xf32> -> vector<8x256xf32>
    %c0_37 = arith.constant 0 : index
    %c0_38 = arith.constant 0 : index
    %97 = vector.load %arg7[%c0_37, %c0_38] : memref<8x1xf32, #tpu.memory_space<vmem>>, vector<8x1xf32>
    %98 = vector.broadcast %97 : vector<8x1xf32> to vector<8x256xf32>
    %99 = arith.addf %96, %98 : vector<8x256xf32>
    %c2_i32 = arith.constant 2 : i32
    %100 = vector.broadcast %c2_i32 : i32 to vector<1x256xi32>
    %101 = arith.cmpi slt, %16, %100 : vector<1x256xi32>
    %c2_i32_39 = arith.constant 2 : i32
    %102 = tpu.dynamic_rotate %99 by %c2_i32_39 dim 1 : vector<8x256xf32>, i32 -> vector<8x256xf32>
    %cst_40 = arith.constant 0.000000e+00 : f32
    %103 = vector.shape_cast %101 : vector<1x256xi1> to vector<1x256xi1>
    %104 = vector.broadcast %103 : vector<1x256xi1> to vector<8x256xi1>
    %105 = vector.broadcast %cst_40 : f32 to vector<8x256xf32>
    %106 = arith.select %104, %105, %102 : vector<8x256xi1>, vector<8x256xf32>
    %c14_i32 = arith.constant 14 : i32
    %107 = vector.broadcast %c14_i32 : i32 to vector<1x256xi32>
    %108 = arith.cmpi sge, %16, %107 : vector<1x256xi32>
    %c254_i32 = arith.constant 254 : i32
    %109 = tpu.dynamic_rotate %99 by %c254_i32 dim 1 : vector<8x256xf32>, i32 -> vector<8x256xf32>
    %cst_41 = arith.constant 0.000000e+00 : f32
    %110 = vector.shape_cast %108 : vector<1x256xi1> to vector<1x256xi1>
    %111 = vector.broadcast %110 : vector<1x256xi1> to vector<8x256xi1>
    %112 = vector.broadcast %cst_41 : f32 to vector<8x256xf32>
    %113 = arith.select %111, %112, %109 : vector<8x256xi1>, vector<8x256xf32>
    %114 = tpu.concatenate %106, %99, %113 in 0 : vector<8x256xf32>, vector<8x256xf32>, vector<8x256xf32> -> vector<24x256xf32>
    %c0_42 = arith.constant 0 : index
    %c0_43 = arith.constant 0 : index
    %115 = vector.load %arg8[%c0_42, %c0_43] : memref<8x24xf32, #tpu.memory_space<vmem>>, vector<8x24xf32>
    %cst_44 = arith.constant dense<0.000000e+00> : vector<8x256xf32>
    %116 = tpu.matmul %115, %114, %cst_44 {dimension_numbers = #tpu.dot_dimension_numbers<[1], [0], [0], [1], [0, 0, 1, 1], [], []>} : vector<8x24xf32>, vector<24x256xf32>, vector<8x256xf32> -> vector<8x256xf32>
    %c0_45 = arith.constant 0 : index
    %c0_46 = arith.constant 0 : index
    %117 = vector.load %arg9[%c0_45, %c0_46] : memref<8x1xf32, #tpu.memory_space<vmem>>, vector<8x1xf32>
    %118 = vector.broadcast %117 : vector<8x1xf32> to vector<8x256xf32>
    %119 = arith.addf %116, %118 : vector<8x256xf32>
    %cst_47 = arith.constant 0.000000e+00 : f32
    %120 = vector.broadcast %cst_47 : f32 to vector<8x256xf32>
    %121 = arith.maximumf %119, %120 : vector<8x256xf32>
    %c0_48 = arith.constant 0 : index
    %c0_49 = arith.constant 0 : index
    %122 = vector.load %arg10[%c0_48, %c0_49] : memref<8x256xf32, #tpu.memory_space<vmem>>, vector<8x256xf32>
    tpu.vector_store %arg10[%c0_48, %c0_49], %121 {strides = array<i32>} : memref<8x256xf32, #tpu.memory_space<vmem>>, vector<8x256xf32>,
    return
  }
  func.func @transform_0(%arg0: i32) -> (i32, i32) {
    %c0_i32 = arith.constant 0 : i32
    %c0_i32_0 = arith.constant 0 : i32
    return %c0_i32, %arg0 : i32, i32
  }
  func.func @transform_1(%arg0: i32) -> (i32, i32) {
    %c0_i32 = arith.constant 0 : i32
    %c0_i32_0 = arith.constant 0 : i32
    %c0_i32_1 = arith.constant 0 : i32
    return %c0_i32, %c0_i32_0 : i32, i32
  }
  func.func @transform_2(%arg0: i32) -> (i32, i32) {
    %c0_i32 = arith.constant 0 : i32
    %c0_i32_0 = arith.constant 0 : i32
    %c0_i32_1 = arith.constant 0 : i32
    return %c0_i32, %c0_i32_0 : i32, i32
  }
  func.func @transform_3(%arg0: i32) -> (i32, i32) {
    %c0_i32 = arith.constant 0 : i32
    %c0_i32_0 = arith.constant 0 : i32
    %c0_i32_1 = arith.constant 0 : i32
    return %c0_i32, %c0_i32_0 : i32, i32
  }
  func.func @transform_4(%arg0: i32) -> (i32, i32) {
    %c0_i32 = arith.constant 0 : i32
    %c0_i32_0 = arith.constant 0 : i32
    %c0_i32_1 = arith.constant 0 : i32
    return %c0_i32, %c0_i32_0 : i32, i32
  }
  func.func @transform_5(%arg0: i32) -> (i32, i32) {
    %c0_i32 = arith.constant 0 : i32
    %c0_i32_0 = arith.constant 0 : i32
    %c0_i32_1 = arith.constant 0 : i32
    return %c0_i32, %c0_i32_0 : i32, i32
  }
  func.func @transform_6(%arg0: i32) -> (i32, i32) {
    %c0_i32 = arith.constant 0 : i32
    %c0_i32_0 = arith.constant 0 : i32
    %c0_i32_1 = arith.constant 0 : i32
    return %c0_i32, %c0_i32_0 : i32, i32
  }
  func.func @transform_7(%arg0: i32) -> (i32, i32) {
    %c0_i32 = arith.constant 0 : i32
    %c0_i32_0 = arith.constant 0 : i32
    %c0_i32_1 = arith.constant 0 : i32
    return %c0_i32, %c0_i32_0 : i32, i32
  }
  func.func @transform_8(%arg0: i32) -> (i32, i32) {
    %c0_i32 = arith.constant 0 : i32
    %c0_i32_0 = arith.constant 0 : i32
    %c0_i32_1 = arith.constant 0 : i32
    return %c0_i32, %c0_i32_0 : i32, i32
  }
  func.func @transform_9(%arg0: i32) -> (i32, i32) {
    %c0_i32 = arith.constant 0 : i32
    %c0_i32_0 = arith.constant 0 : i32
    return %c0_i32, %arg0 : i32, i32
  }
}

</mosaic_0001>

<llo_original>
// kernel: convblock_forward.1
$region0: #{convblock_forward.1}
  #allocation0 [shape = 'u32[]', space=smem, size = 0x4, offset = 0x4, fixed_abs, tag = 'smem constant byte address 0x4 - core index']
  #allocation1 [shape = 'u32[144,128]{1,0:T(1,128)}', space=vmem, size = 0x12000, scoped, tag = 'internal scratch']
  %s0 = inlined_call_operand.vmem [shape: f32[4,512], index: 0, kind: input, shape index: {}]
  %s1 = inlined_call_operand.vmem [shape: f32[8,12], index: 1, kind: input, shape index: {}]
  %s2 = inlined_call_operand.vmem [shape: f32[8,1], index: 2, kind: input, shape index: {}]
  %s3 = inlined_call_operand.vmem [shape: f32[8,24], index: 3, kind: input, shape index: {}]
  %s4 = inlined_call_operand.vmem [shape: f32[8,1], index: 4, kind: input, shape index: {}]
  %s5 = inlined_call_operand.vmem [shape: f32[8,24], index: 5, kind: input, shape index: {}]
  %s6 = inlined_call_operand.vmem [shape: f32[8,1], index: 6, kind: input, shape index: {}]
  %s7 = inlined_call_operand.vmem [shape: f32[8,24], index: 7, kind: input, shape index: {}]
  %s8 = inlined_call_operand.vmem [shape: f32[8,1], index: 8, kind: input, shape index: {}]
  %s9 = inlined_call_operand.vmem [shape: f32[8,512], index: 9, kind: output, shape index: {}]
  %s10 = sld [smem:[#allocation0]]
  $region69: #{convblock_forward.1} parent=0
    _
  %s12 = ssub.s32 1, %s10
  %s13 = scalar_select 0, %s12, %s10
  loop: start=0, step=1, limit=4
  $region2: #{convblock_forward.1} parent=0 // loop_pre_header
    _
  $region3: #{convblock_forward.1} parent=0 // loop_header
    %s15 = sphi 0, %s19
    %p16 = scmp.ge.s32.totalorder %s15, 4
    %s25 = sphi 0, %s27
    %s28 = sphi 0, %s25
    %s29 = sphi 0, %s28
    %s45 = sphi 0, %s29
    %s49 = sphi 0, %s49
    %s51 = sphi 0, %s49
    %s52 = sphi 0, %s51
    %s66 = sphi 0, %s52
    %s70 = sphi 0, %s70
    %s72 = sphi 0, %s70
    %s73 = sphi 0, %s72
    %s87 = sphi 0, %s73
    %s91 = sphi 0, %s91
    %s93 = sphi 0, %s91
    %s94 = sphi 0, %s93
    %s108 = sphi 0, %s94
    %s112 = sphi 0, %s112
    %s114 = sphi 0, %s112
    %s115 = sphi 0, %s114
    %s129 = sphi 0, %s115
    %s133 = sphi 0, %s133
    %s135 = sphi 0, %s133
    %s136 = sphi 0, %s135
    %s150 = sphi 0, %s136
    %s154 = sphi 0, %s154
    %s156 = sphi 0, %s154
    %s157 = sphi 0, %s156
    %s171 = sphi 0, %s157
    %s175 = sphi 0, %s175
    %s177 = sphi 0, %s175
    %s178 = sphi 0, %s177
    %s192 = sphi 0, %s178
    %s196 = sphi 0, %s196
    %s198 = sphi 0, %s196
    %s199 = sphi 0, %s198
    %s213 = sphi 0, %s199
    %s219 = sphi 0, %s221
    %s222 = sphi 0, %s219
    %s223 = sphi 0, %s222
    %s239 = sphi 0, %s223
  $region4: #{convblock_forward.1} parent=0 // loop_header_branch
    %18 = sbr.rel (%p16) target = $region8
  $region5: #{convblock_forward.1} parent=0 // loop_body
    %s20 = ssub.s32 %s15, 1
    %s21 = ssub.s32 %s15, 2
    %s22 = sadd.s32 %s15, 1
    %s23 = ssub.s32 %s15, %s22
    %p24 = scmp.eq.s32.totalorder %s23, 0
    %s26 = sadd.s32 %s25, 1
    %s27 = scalar_select %p24, %s25, %s26
    %p30 = pneg %p24
    %p31 = scmp.eq.s32.totalorder %s15, 1
    %p32 = por %p30, %p31
    %p33 = scmp.ne.s32.totalorder %s25, %s28
    %p34 = scmp.eq.s32.totalorder %s15, 0
    %p35 = por %p33, %p34
    %p36 = scmp.ne.s32.totalorder %s25, %s28
    %p37 = scmp.eq.s32.totalorder %s20, 1
    %p38 = por %p36, %p37
    %p39 = scmp.ne.s32.totalorder %s28, %s29
    %p40 = scmp.eq.s32.totalorder %s20, 0
    %p41 = por %p39, %p40
    %p42 = scmp.ne.s32.totalorder %s28, %s29
    %p43 = scmp.eq.s32.totalorder %s21, 1
    %p44 = por %p42, %p43
    %p46 = scmp.ne.s32.totalorder %s29, %s45
    %p47 = scmp.eq.s32.totalorder %s21, 0
    %p48 = por %p46, %p47
    %s50 = sadd.s32 %s49, 1
    %p53 = scmp.eq.s32.totalorder %s15, 1
    %p54 = scmp.ne.s32.totalorder %s49, %s51
    %p55 = scmp.eq.s32.totalorder %s15, 0
    %p56 = por %p54, %p55
    %p57 = scmp.ne.s32.totalorder %s49, %s51
    %p58 = scmp.eq.s32.totalorder %s20, 1
    %p59 = por %p57, %p58
    %p60 = scmp.ne.s32.totalorder %s51, %s52
    %p61 = scmp.eq.s32.totalorder %s20, 0
    %p62 = por %p60, %p61
    %p63 = scmp.ne.s32.totalorder %s51, %s52
    %p64 = scmp.eq.s32.totalorder %s21, 1
    %p65 = por %p63, %p64
    %p67 = scmp.ne.s32.totalorder %s52, %s66
    %p68 = scmp.eq.s32.totalorder %s21, 0
    %p69 = por %p67, %p68
    %s71 = sadd.s32 %s70, 1
    %p74 = scmp.eq.s32.totalorder %s15, 1
    %p75 = scmp.ne.s32.totalorder %s70, %s72
    %p76 = scmp.eq.s32.totalorder %s15, 0
    %p77 = por %p75, %p76
    %p78 = scmp.ne.s32.totalorder %s70, %s72
    %p79 = scmp.eq.s32.totalorder %s20, 1
    %p80 = por %p78, %p79
    %p81 = scmp.ne.s32.totalorder %s72, %s73
    %p82 = scmp.eq.s32.totalorder %s20, 0
    %p83 = por %p81, %p82
    %p84 = scmp.ne.s32.totalorder %s72, %s73
    %p85 = scmp.eq.s32.totalorder %s21, 1
    %p86 = por %p84, %p85
    %p88 = scmp.ne.s32.totalorder %s73, %s87
    %p89 = scmp.eq.s32.totalorder %s21, 0
    %p90 = por %p88, %p89
    %s92 = sadd.s32 %s91, 1
    %p95 = scmp.eq.s32.totalorder %s15, 1
    %p96 = scmp.ne.s32.totalorder %s91, %s93
    %p97 = scmp.eq.s32.totalorder %s15, 0
    %p98 = por %p96, %p97
    %p99 = scmp.ne.s32.totalorder %s91, %s93
    %p100 = scmp.eq.s32.totalorder %s20, 1
    %p101 = por %p99, %p100
    %p102 = scmp.ne.s32.totalorder %s93, %s94
    %p103 = scmp.eq.s32.totalorder %s20, 0
    %p104 = por %p102, %p103
    %p105 = scmp.ne.s32.totalorder %s93, %s94
    %p106 = scmp.eq.s32.totalorder %s21, 1
    %p107 = por %p105, %p106
    %p109 = scmp.ne.s32.totalorder %s94, %s108
    %p110 = scmp.eq.s32.totalorder %s21, 0
    %p111 = por %p109, %p110
    %s113 = sadd.s32 %s112, 1
    %p116 = scmp.eq.s32.totalorder %s15, 1
    %p117 = scmp.ne.s32.totalorder %s112, %s114
    %p118 = scmp.eq.s32.totalorder %s15, 0
    %p119 = por %p117, %p118
    %p120 = scmp.ne.s32.totalorder %s112, %s114
    %p121 = scmp.eq.s32.totalorder %s20, 1
    %p122 = por %p120, %p121
    %p123 = scmp.ne.s32.totalorder %s114, %s115
    %p124 = scmp.eq.s32.totalorder %s20, 0
    %p125 = por %p123, %p124
    %p126 = scmp.ne.s32.totalorder %s114, %s115
    %p127 = scmp.eq.s32.totalorder %s21, 1
    %p128 = por %p126, %p127
    %p130 = scmp.ne.s32.totalorder %s115, %s129
    %p131 = scmp.eq.s32.totalorder %s21, 0
    %p132 = por %p130, %p131
    %s134 = sadd.s32 %s133, 1
    %p137 = scmp.eq.s32.totalorder %s15, 1
    %p138 = scmp.ne.s32.totalorder %s133, %s135
    %p139 = scmp.eq.s32.totalorder %s15, 0
    %p140 = por %p138, %p139
    %p141 = scmp.ne.s32.totalorder %s133, %s135
    %p142 = scmp.eq.s32.totalorder %s20, 1
    %p143 = por %p141, %p142
    %p144 = scmp.ne.s32.totalorder %s135, %s136
    %p145 = scmp.eq.s32.totalorder %s20, 0
    %p146 = por %p144, %p145
    %p147 = scmp.ne.s32.totalorder %s135, %s136
    %p148 = scmp.eq.s32.totalorder %s21, 1
    %p149 = por %p147, %p148
    %p151 = scmp.ne.s32.totalorder %s136, %s150
    %p152 = scmp.eq.s32.totalorder %s21, 0
    %p153 = por %p151, %p152
    %s155 = sadd.s32 %s154, 1
    %p158 = scmp.eq.s32.totalorder %s15, 1
    %p159 = scmp.ne.s32.totalorder %s154, %s156
    %p160 = scmp.eq.s32.totalorder %s15, 0
    %p161 = por %p159, %p160
    %p162 = scmp.ne.s32.totalorder %s154, %s156
    %p163 = scmp.eq.s32.totalorder %s20, 1
    %p164 = por %p162, %p163
    %p165 = scmp.ne.s32.totalorder %s156, %s157
    %p166 = scmp.eq.s32.totalorder %s20, 0
    %p167 = por %p165, %p166
    %p168 = scmp.ne.s32.totalorder %s156, %s157
    %p169 = scmp.eq.s32.totalorder %s21, 1
    %p170 = por %p168, %p169
    %p172 = scmp.ne.s32.totalorder %s157, %s171
    %p173 = scmp.eq.s32.totalorder %s21, 0
    %p174 = por %p172, %p173
    %s176 = sadd.s32 %s175, 1
    %p179 = scmp.eq.s32.totalorder %s15, 1
    %p180 = scmp.ne.s32.totalorder %s175, %s177
    %p181 = scmp.eq.s32.totalorder %s15, 0
    %p182 = por %p180, %p181
    %p183 = scmp.ne.s32.totalorder %s175, %s177
    %p184 = scmp.eq.s32.totalorder %s20, 1
    %p185 = por %p183, %p184
    %p186 = scmp.ne.s32.totalorder %s177, %s178
    %p187 = scmp.eq.s32.totalorder %s20, 0
    %p188 = por %p186, %p187
    %p189 = scmp.ne.s32.totalorder %s177, %s178
    %p190 = scmp.eq.s32.totalorder %s21, 1
    %p191 = por %p189, %p190
    %p193 = scmp.ne.s32.totalorder %s178, %s192
    %p194 = scmp.eq.s32.totalorder %s21, 0
    %p195 = por %p193, %p194
    %s197 = sadd.s32 %s196, 1
    %p200 = scmp.eq.s32.totalorder %s15, 1
    %p201 = scmp.ne.s32.totalorder %s196, %s198
    %p202 = scmp.eq.s32.totalorder %s15, 0
    %p203 = por %p201, %p202
    %p204 = scmp.ne.s32.totalorder %s196, %s198
    %p205 = scmp.eq.s32.totalorder %s20, 1
    %p206 = por %p204, %p205
    %p207 = scmp.ne.s32.totalorder %s198, %s199
    %p208 = scmp.eq.s32.totalorder %s20, 0
    %p209 = por %p207, %p208
    %p210 = scmp.ne.s32.totalorder %s198, %s199
    %p211 = scmp.eq.s32.totalorder %s21, 1
    %p212 = por %p210, %p211
    %p214 = scmp.ne.s32.totalorder %s199, %s213
    %p215 = scmp.eq.s32.totalorder %s21, 0
    %p216 = por %p214, %p215
    %s217 = ssub.s32 %s15, %s22
    %p218 = scmp.eq.s32.totalorder %s217, 0
    %s220 = sadd.s32 %s219, 1
    %s221 = scalar_select %p218, %s219, %s220
    %p224 = pneg %p218
    %p225 = scmp.eq.s32.totalorder %s15, 1
    %p226 = por %p224, %p225
    %p227 = scmp.ne.s32.totalorder %s219, %s222
    %p228 = scmp.eq.s32.totalorder %s15, 0
    %p229 = por %p227, %p228
    %p230 = scmp.ne.s32.totalorder %s219, %s222
    %p231 = scmp.eq.s32.totalorder %s20, 1
    %p232 = por %p230, %p231
    %p233 = scmp.ne.s32.totalorder %s222, %s223
    %p234 = scmp.eq.s32.totalorder %s20, 0
    %p235 = por %p233, %p234
    %p236 = scmp.ne.s32.totalorder %s222, %s223
    %p237 = scmp.eq.s32.totalorder %s21, 1
    %p238 = por %p236, %p237
    %p240 = scmp.ne.s32.totalorder %s223, %s239
    %p241 = scmp.eq.s32.totalorder %s21, 0
    %p242 = por %p240, %p241
    %p243 = scmp.le.s32.totalorder 1, %s15
    %p244 = scmp.lt.s32.totalorder %s15, 3
    %p245 = pnand %p243, %p244
    %p246 = pneg %p245
    // Predicated region
    $region9: #{convblock_forward.1} parent=5 // pred_check
      _
    $region10: #{convblock_forward.1} parent=5 // pred_check_branch
      %248 = sbr.rel (%p245) target = $region12
    $region11: #{convblock_forward.1} parent=5 // pred_region
      %s249 = ssub.s32 %s15, 1
      // Predicated region
      $region13: #{convblock_forward.1} parent=11 // pred_check
        %p250 = pneg %p62
      $region14: #{convblock_forward.1} parent=11 // pred_check_branch
        %252 = sbr.rel (%p250) target = $region16
      $region15: #{convblock_forward.1} parent=11 // pred_region
        _
      $region16: #{convblock_forward.1} parent=11 // pred_fallthru
        _
      // Predicated region
      $region17: #{convblock_forward.1} parent=11 // pred_check
        %p253 = pneg %p83
      $region18: #{convblock_forward.1} parent=11 // pred_check_branch
        %255 = sbr.rel (%p253) target = $region20
      $region19: #{convblock_forward.1} parent=11 // pred_region
        _
      $region20: #{convblock_forward.1} parent=11 // pred_fallthru
        _
      // Predicated region
      $region21: #{convblock_forward.1} parent=11 // pred_check
        %p256 = pneg %p104
      $region22: #{convblock_forward.1} parent=11 // pred_check_branch
        %258 = sbr.rel (%p256) target = $region24
      $region23: #{convblock_forward.1} parent=11 // pred_region
        _
      $region24: #{convblock_forward.1} parent=11 // pred_fallthru
        _
      // Predicated region
      $region25: #{convblock_forward.1} parent=11 // pred_check
        %p259 = pneg %p125
      $region26: #{convblock_forward.1} parent=11 // pred_check_branch
        %261 = sbr.rel (%p259) target = $region28
      $region27: #{convblock_forward.1} parent=11 // pred_region
        _
      $region28: #{convblock_forward.1} parent=11 // pred_fallthru
        _
      // Predicated region
      $region29: #{convblock_forward.1} parent=11 // pred_check
        %p262 = pneg %p146
      $region30: #{convblock_forward.1} parent=11 // pred_check_branch
        %264 = sbr.rel (%p262) target = $region32
      $region31: #{convblock_forward.1} parent=11 // pred_region
        _
      $region32: #{convblock_forward.1} parent=11 // pred_fallthru
        _
      // Predicated region
      $region33: #{convblock_forward.1} parent=11 // pred_check
        %p265 = pneg %p167
      $region34: #{convblock_forward.1} parent=11 // pred_check_branch
        %267 = sbr.rel (%p265) target = $region36
      $region35: #{convblock_forward.1} parent=11 // pred_region
        _
      $region36: #{convblock_forward.1} parent=11 // pred_fallthru
        _
      // Predicated region
      $region37: #{convblock_forward.1} parent=11 // pred_check
        %p268 = pneg %p188
      $region38: #{convblock_forward.1} parent=11 // pred_check_branch
        %270 = sbr.rel (%p268) target = $region40
      $region39: #{convblock_forward.1} parent=11 // pred_region
        _
      $region40: #{convblock_forward.1} parent=11 // pred_fallthru
        _
      // Predicated region
      $region41: #{convblock_forward.1} parent=11 // pred_check
        %p271 = pneg %p209
      $region42: #{convblock_forward.1} parent=11 // pred_check_branch
        %273 = sbr.rel (%p271) target = $region44
      $region43: #{convblock_forward.1} parent=11 // pred_region
        _
      $region44: #{convblock_forward.1} parent=11 // pred_fallthru
        _
    $region12: #{convblock_forward.1} parent=5 // pred_fallthru
      _
    %p274 = scmp.lt.s32.totalorder %s15, 2
    // Predicated region
    $region45: #{convblock_forward.1} parent=5 // pred_check
      %p275 = pneg %p274
    $region46: #{convblock_forward.1} parent=5 // pred_check_branch
      %277 = sbr.rel (%p275) target = $region48
    $region47: #{convblock_forward.1} parent=5 // pred_region
      // Predicated region
      $region49: #{convblock_forward.1} parent=47 // pred_check
        %p278 = pneg %p35
      $region50: #{convblock_forward.1} parent=47 // pred_check_branch
        %280 = sbr.rel (%p278) target = $region52
      $region51: #{convblock_forward.1} parent=47 // pred_region
        %s281 = smul.u32 2, %s15
        %p282 = scmp.lt.s32.totalorder %s281, 3
        %s283 = scalar_select %p282, %s281, 3
        %s284 = smul.addr %s283, 4
        %s285 = scalar_lea.vmem %s0, %s284
        %s286 = smul.u32 2, %s15
      $region52: #{convblock_forward.1} parent=47 // pred_fallthru
        _
    $region48: #{convblock_forward.1} parent=5 // pred_fallthru
      _
    %p287 = scmp.le.s32.totalorder 1, %s15
    %p288 = scmp.lt.s32.totalorder %s15, 3
    %p289 = pnand %p287, %p288
    %p290 = pneg %p289
    // Predicated region
    $region53: #{convblock_forward.1} parent=5 // pred_check
      _
    $region54: #{convblock_forward.1} parent=5 // pred_check_branch
      %292 = sbr.rel (%p289) target = $region56
    $region55: #{convblock_forward.1} parent=5 // pred_region
      %s293 = ssub.s32 %s15, 1
      %s294 = smul.u32 2, %s20
      %p295 = scmp.lt.s32.totalorder %s294, 3
      %s296 = scalar_select %p295, %s294, 3
      %s297 = smul.addr %s296, 4
      %s298 = scalar_lea.vmem %s0, %s297
      %p299 = pneg %p41
      %p300 = pneg %p38
      %p301 = pneg %p62
      %p302 = pneg %p59
      %p303 = pneg %p83
      %p304 = pneg %p80
      %p305 = pneg %p104
      %p306 = pneg %p101
      %p307 = pneg %p125
      %p308 = pneg %p122
      %p309 = pneg %p146
      %p310 = pneg %p143
      %p311 = pneg %p167
      %p312 = pneg %p164
      %p313 = pneg %p188
      %p314 = pneg %p185
      %p315 = pneg %p209
      %p316 = pneg %p206
      %p317 = pneg %p235
      %p318 = pneg %p232
      %s319 = smul.u32 2, %s20
      %p320 = scmp.lt.s32.totalorder %s319, 3
      %s321 = scalar_select %p320, %s319, 3
      %s322 = smul.addr %s321, 8
      %s323 = scalar_lea.vmem %s9, %s322
      %s324 = smul.u32 2, %s20
      %p325 = scmp.lt.s32.totalorder %s324, 3
      %s326 = scalar_select %p325, %s324, 3
      %s327 = smul.addr %s326, 4
      %s328 = scalar_lea.vmem %s0, %s327
      %s329 = smul.u32 2, %s20
      %s330 = smul.u32 2, %s20
      %p331 = scmp.lt.s32.totalorder %s330, 3
      %s332 = scalar_select %p331, %s330, 3
      %s333 = smul.addr %s332, 8
      %s334 = scalar_lea.vmem %s9, %s333
      %s335 = smul.u32 2, %s20
      %v336 = vlaneseq
      %v337 = vand.u32 %v336, 127
      %v338 = vadd.s32 %v337, 128
      %vm339 = vcmp.lt.s32.totalorder %v337, 0
      %v340 = vsub.s32 0, %v337
      %v341 = vsel %vm339, %v340, %v337
      %v342 = vshrl.u32 %v341, 4
      %v343 = vand.u32 %v341, 15
      %v344 = vsub.s32 0, %v343
      %v345 = vsel %vm339, %v344, %v343
      %vm346 = vcmp.lt.s32.totalorder %v338, 0
      %v347 = vsub.s32 0, %v338
      %v348 = vsel %vm346, %v347, %v338
      %v349 = vshrl.u32 %v348, 4
      %v350 = vand.u32 %v348, 15
      %v351 = vsub.s32 0, %v350
      %v352 = vsel %vm346, %v351, %v350
      %vm353 = vcmp.ne.s32.totalorder %v345, 0
      %vm354 = vcmp.ne.s32.totalorder %v352, 0
      %vm355 = vcmp.lt.s32.totalorder %v345, 0
      %vm356 = vcmp.lt.s32.totalorder %v352, 0
      %vm357 = vmand %vm355, %vm353
      %vm358 = vmand %vm356, %vm354
      %v359 = vadd.s32 %v345, 16
      %v360 = vadd.s32 %v352, 16
      %v361 = vsel %vm357, %v359, %v345
      %v362 = vsel %vm358, %v360, %v352
      %vm363 = vcmp.lt.s32.totalorder %v337, 0
      %v364 = vsub.s32 0, %v337
      %v365 = vsel %vm363, %v364, %v337
      %v366 = vshrl.u32 %v365, 8
      %v367 = vand.u32 %v365, 255
      %v368 = vsub.s32 0, %v367
      %v369 = vsel %vm363, %v368, %v367
      %vm370 = vcmp.lt.s32.totalorder %v338, 0
      %v371 = vsub.s32 0, %v338
      %v372 = vsel %vm370, %v371, %v338
      %v373 = vshrl.u32 %v372, 8
      %v374 = vand.u32 %v372, 255
      %v375 = vsub.s32 0, %v374
      %v376 = vsel %vm370, %v375, %v374
      %vm377 = vcmp.ne.s32.totalorder %v369, 0
      %vm378 = vcmp.ne.s32.totalorder %v376, 0
      %vm379 = vcmp.lt.s32.totalorder %v369, 0
      %vm380 = vcmp.lt.s32.totalorder %v376, 0
      %vm381 = vmand %vm379, %vm377
      %vm382 = vmand %vm380, %vm378
      %v383 = vadd.s32 %v369, 256
      %v384 = vadd.s32 %v376, 256
      %v385 = vsel %vm381, %v383, %v369
      %v386 = vsel %vm382, %v384, %v376
      %v387 = vld [vmem:[%s328] sm:$0xff]
      %vm388 = vcmp.lt.s32.totalorder %v361, 1
      %vm389 = vcmp.lt.s32.totalorder %v362, 1
      %v391 = vcombine.high %v387, %v387
      %393 = vrot.lane.b32.xlu0 %v387, 1
      %v394 = vpop.permute.xlu0 %393
      %395 = vrot.lane.b32.xlu0 %v391, 1
      %v396 = vpop.permute.xlu0 %395
      %vm397 = vcmp.lt.s32.totalorder %v337, 1
      %v398 = vsel %vm397, %v394, %v396
      %v399 = vsel %vm397, %v396, %v394
      %v400 = vsel %vm388, 1, 0
      %v401 = vsel %vm389, 1, 0
      %vm402 = vcmp.eq.s32.totalorder %v400, 1
      %vm403 = vcmp.eq.s32.totalorder %v401, 1
      %v404 = vsel %vm402, 0.0, %v399
      %v405 = vsel %vm403, 0.0, %v398
      %vm406 = vcmp.ge.s32.totalorder %v361, 15
      %vm407 = vcmp.ge.s32.totalorder %v362, 15
      %408 = vrot.lane.b32.xlu0 %v387, 127
      %v409 = vpop.permute.xlu0 %408
      %410 = vrot.lane.b32.xlu0 %v391, 127
      %v411 = vpop.permute.xlu0 %410
      %vm412 = vcmp.lt.s32.totalorder %v337, 127
      %v413 = vsel %vm412, %v409, %v411
      %v414 = vsel %vm412, %v411, %v409
      %v415 = vsel %vm406, 1, 0
      %v416 = vsel %vm407, 1, 0
      %vm417 = vcmp.eq.s32.totalorder %v415, 1
      %vm418 = vcmp.eq.s32.totalorder %v416, 1
      %v419 = vsel %vm417, 0.0, %v413
      %v420 = vsel %vm418, 0.0, %v414
      %v421 = vcombine.low %v387, %v387
      %vm423 = vcmask 1043456
      %v424 = vsel %vm423, %v404, %v421
      %v425 = vsel %vm423, %v405, %v387
      %v426 = vld [vmem:[%s1] sm:$0xff]
      %v427 = vld [vmem:[%s2] sm:$0xff]
      %429 = vset.pattern.permute.xlu0 0
      %430 = vperm.xlu0 %429, %v427
      %v431 = vpop.permute.xlu0 %430
      %vm433 = vcmask 97280
      %v435 = vsel %vm433, %v426, 0
      %v438 = vsel %vm423, %v419, 0
      %v441 = vsel %vm423, %v420, 0
      %443 = vmatprep.subr.mxu0 %v425
      %444 = vmatpush1.msra.mxu0 %v424
      %445 = vmatprep.subr.mxu0 %v441
      %446 = vmatpush1.msra.mxu0 %v438
      %447 = vmatprep.subr.mxu0 0.0
      %448 = vmatpush1.msra.mxu0 0.0
      %449 = vmatprep.subr.mxu0 0.0
      %450 = vmatpush1.msra.mxu0 0.0
      %451 = vmatprep.subr.mxu0 0.0
      %452 = vmatpush1.msra.mxu0 0.0
      %453 = vmatprep.subr.mxu0 0.0
      %454 = vmatpush1.msra.mxu0 0.0
      %455 = vmatprep.subr.mxu0 0.0
      %456 = vmatpush1.msra.mxu0 0.0
      %457 = vmatprep.subr.mxu0 0.0
      %458 = vmatpush1.msra.mxu0 0.0
      %459 = vmatprep.subr.mxu0 0.0
      %460 = vmatpush1.msra.mxu0 0.0
      %461 = vmatprep.subr.mxu0 0.0
      %462 = vmatpush1.msra.mxu0 0.0
      %463 = vmatprep.subr.mxu0 0.0
      %464 = vmatpush1.msra.mxu0 0.0
      %465 = vmatprep.subr.mxu0 0.0
      %466 = vmatpush1.msra.mxu0 0.0
      %467 = vmatprep.subr.mxu0 0.0
      %468 = vmatpush1.msra.mxu0 0.0
      %469 = vmatprep.subr.mxu0 0.0
      %470 = vmatpush1.msra.mxu0 0.0
      %471 = vmatprep.subr.mxu0 0.0
      %472 = vmatpush1.msra.mxu0 0.0
      %473 = vmatprep.subr.mxu0 0.0
      %474 = vmatpush1.msra.mxu0 0.0
      %475 = vmatprep.subr.mxu0 0.0
      %476 = vmatpush1.msra.mxu0 0.0
      %477 = vmatprep.subr.mxu0 0.0
      %478 = vmatpush1.msra.mxu0 0.0
      %479 = vmatprep.subr.mxu0 0.0
      %480 = vmatpush1.msra.mxu0 0.0
      %481 = vmatprep.subr.mxu0 0.0
      %482 = vmatpush1.msra.mxu0 0.0
      %483 = vmatprep.subr.mxu0 0.0
      %484 = vmatpush1.msra.mxu0 0.0
      %485 = vmatprep.subr.mxu0 0.0
      %486 = vmatpush1.msra.mxu0 0.0
      %487 = vmatprep.subr.mxu0 0.0
      %488 = vmatpush1.msra.mxu0 0.0
      %489 = vmatprep.subr.mxu0 0.0
      %490 = vmatpush1.msra.mxu0 0.0
      %491 = vmatprep.subr.mxu0 0.0
      %492 = vmatpush1.msra.mxu0 0.0
      %493 = vmatprep.subr.mxu0 0.0
      %494 = vmatpush1.msra.mxu0 0.0
      %495 = vmatprep.subr.mxu0 0.0
      %496 = vmatpush1.msra.mxu0 0.0
      %497 = vmatprep.subr.mxu0 0.0
      %498 = vmatpush1.msra.mxu0 0.0
      %499 = vmatprep.subr.mxu0 0.0
      %500 = vmatpush1.msra.mxu0 0.0
      %501 = vmatprep.subr.mxu0 0.0
      %502 = vmatpush1.msra.mxu0 0.0
      %503 = vmatprep.subr.mxu0 0.0
      %504 = vmatpush1.msra.mxu0 0.0
      %505 = vmatprep.subr.mxu0 0.0
      %506 = vmatpush1.msra.mxu0 0.0
      %507 = vmatprep.mubr.f32.mxu0 0.0
      %508 = vmatmul.mubr.f32.gmra.mrb[0].mxu0 %v435
      %v509 = vpop.f32.mrb[0].mxu0
      %v510 = vadd.f32 %v431, %v509
      %v511 = vpop.f32.mrb[0].mxu0
      %v512 = vadd.f32 %v431, %v511
      %513 = vdwg.mxu0
      %vm514 = vcmp.lt.s32.totalorder %v385, 16
      %vm515 = vcmp.lt.s32.totalorder %v386, 16
      %516 = vrot.lane.b32.xlu0 %v510, 16
      %v517 = vpop.permute.xlu0 %516
      %518 = vrot.lane.b32.xlu0 %v512, 16
      %v519 = vpop.permute.xlu0 %518
      %vm520 = vcmp.lt.s32.totalorder %v337, 16
      %v521 = vsel %vm520, %v517, %v519
      %v522 = vsel %vm520, %v519, %v517
      %v523 = vsel %vm514, 1, 0
      %v524 = vsel %vm515, 1, 0
      %vm525 = vcmp.eq.s32.totalorder %v523, 1
      %vm526 = vcmp.eq.s32.totalorder %v524, 1
      %v527 = vsel %vm525, 0.0, %v522
      %v528 = vsel %vm526, 0.0, %v521
      %vm529 = vcmp.ge.s32.totalorder %v385, 240
      %vm530 = vcmp.ge.s32.totalorder %v386, 240
      %531 = vrot.lane.b32.xlu0 %v510, 112
      %v532 = vpop.permute.xlu0 %531
      %533 = vrot.lane.b32.xlu0 %v512, 112
      %v534 = vpop.permute.xlu0 %533
      %vm535 = vcmp.lt.s32.totalorder %v337, 112
      %v536 = vsel %vm535, %v532, %v534
      %v537 = vsel %vm535, %v534, %v532
      %v538 = vsel %vm529, 1, 0
      %v539 = vsel %vm530, 1, 0
      %vm540 = vcmp.eq.s32.totalorder %v538, 1
      %vm541 = vcmp.eq.s32.totalorder %v539, 1
      %v542 = vsel %vm540, 0.0, %v536
      %v543 = vsel %vm541, 0.0, %v537
      %v544 = vld [vmem:[%s3] sm:$0xff]
      %v545 = vld [vmem:[%s4] sm:$0xff]
      %547 = vset.pattern.permute.xlu0 0
      %548 = vperm.xlu0 %547, %v545
      %v549 = vpop.permute.xlu0 %548
      %vm551 = vcmask 195584
      %v553 = vsel %vm551, %v544, 0
      %555 = vmatprep.subr.mxu0 %v528
      %556 = vmatpush1.msra.mxu0 %v527
      %557 = vmatprep.subr.mxu0 %v512
      %558 = vmatpush1.msra.mxu0 %v510
      %559 = vmatprep.subr.mxu0 %v543
      %560 = vmatpush1.msra.mxu0 %v542
      %561 = vmatprep.subr.mxu0 0.0
      %562 = vmatpush1.msra.mxu0 0.0
      %563 = vmatprep.subr.mxu0 0.0
      %564 = vmatpush1.msra.mxu0 0.0
      %565 = vmatprep.subr.mxu0 0.0
      %566 = vmatpush1.msra.mxu0 0.0
      %567 = vmatprep.subr.mxu0 0.0
      %568 = vmatpush1.msra.mxu0 0.0
      %569 = vmatprep.subr.mxu0 0.0
      %570 = vmatpush1.msra.mxu0 0.0
      %571 = vmatprep.subr.mxu0 0.0
      %572 = vmatpush1.msra.mxu0 0.0
      %573 = vmatprep.subr.mxu0 0.0
      %574 = vmatpush1.msra.mxu0 0.0
      %575 = vmatprep.subr.mxu0 0.0
      %576 = vmatpush1.msra.mxu0 0.0
      %577 = vmatprep.subr.mxu0 0.0
      %578 = vmatpush1.msra.mxu0 0.0
      %579 = vmatprep.subr.mxu0 0.0
      %580 = vmatpush1.msra.mxu0 0.0
      %581 = vmatprep.subr.mxu0 0.0
      %582 = vmatpush1.msra.mxu0 0.0
      %583 = vmatprep.subr.mxu0 0.0
      %584 = vmatpush1.msra.mxu0 0.0
      %585 = vmatprep.subr.mxu0 0.0
      %586 = vmatpush1.msra.mxu0 0.0
      %587 = vmatprep.subr.mxu0 0.0
      %588 = vmatpush1.msra.mxu0 0.0
      %589 = vmatprep.subr.mxu0 0.0
      %590 = vmatpush1.msra.mxu0 0.0
      %591 = vmatprep.subr.mxu0 0.0
      %592 = vmatpush1.msra.mxu0 0.0
      %593 = vmatprep.subr.mxu0 0.0
      %594 = vmatpush1.msra.mxu0 0.0
      %595 = vmatprep.subr.mxu0 0.0
      %596 = vmatpush1.msra.mxu0 0.0
      %597 = vmatprep.subr.mxu0 0.0
      %598 = vmatpush1.msra.mxu0 0.0
      %599 = vmatprep.subr.mxu0 0.0
      %600 = vmatpush1.msra.mxu0 0.0
      %601 = vmatprep.subr.mxu0 0.0
      %602 = vmatpush1.msra.mxu0 0.0
      %603 = vmatprep.subr.mxu0 0.0
      %604 = vmatpush1.msra.mxu0 0.0
      %605 = vmatprep.subr.mxu0 0.0
      %606 = vmatpush1.msra.mxu0 0.0
      %607 = vmatprep.subr.mxu0 0.0
      %608 = vmatpush1.msra.mxu0 0.0
      %609 = vmatprep.subr.mxu0 0.0
      %610 = vmatpush1.msra.mxu0 0.0
      %611 = vmatprep.subr.mxu0 0.0
      %612 = vmatpush1.msra.mxu0 0.0
      %613 = vmatprep.subr.mxu0 0.0
      %614 = vmatpush1.msra.mxu0 0.0
      %615 = vmatprep.subr.mxu0 0.0
      %616 = vmatpush1.msra.mxu0 0.0
      %617 = vmatprep.subr.mxu0 0.0
      %618 = vmatpush1.msra.mxu0 0.0
      %619 = vmatprep.mubr.f32.mxu0 0.0
      %620 = vmatmul.mubr.f32.gmra.mrb[0].mxu0 %v553
      %v621 = vpop.f32.mrb[0].mxu0
      %v622 = vadd.f32 %v549, %v621
      %v623 = vpop.f32.mrb[0].mxu0
      %v624 = vadd.f32 %v549, %v623
      %625 = vdwg.mxu0
      %v626 = vmax.f32 %v622, 0.0
      %v627 = vmax.f32 %v624, 0.0
      %628 = vrot.lane.b32.xlu0 %v626, 127
      %v629 = vpop.permute.xlu0 %628
      %630 = vrot.lane.b32.xlu0 %v627, 127
      %v631 = vpop.permute.xlu0 %630
      %v632 = vsel %vm412, %v629, %v631
      %v633 = vsel %vm412, %v631, %v629
      %v634 = vmax.f32 %v626, %v632
      %v635 = vmax.f32 %v627, %v633
      %636 = vrot.lane.b32.xlu0 %v634, 112
      %v637 = vpop.permute.xlu0 %636
      %638 = vrot.lane.b32.xlu0 %v635, 112
      %v639 = vpop.permute.xlu0 %638
      %v640 = vsel %vm535, %v637, %v639
      %v641 = vsel %vm535, %v639, %v637
      %v642 = vmax.f32 %v634, %v640
      %v643 = vmax.f32 %v635, %v641
      %vm644 = vcmp.lt.s32.totalorder %v385, 32
      %vm645 = vcmp.lt.s32.totalorder %v386, 32
      %646 = vrot.lane.b32.xlu0 %v642, 32
      %v647 = vpop.permute.xlu0 %646
      %648 = vrot.lane.b32.xlu0 %v643, 32
      %v649 = vpop.permute.xlu0 %648
      %vm650 = vcmp.lt.s32.totalorder %v337, 32
      %v651 = vsel %vm650, %v647, %v649
      %v652 = vsel %vm650, %v649, %v647
      %v653 = vsel %vm644, 1, 0
      %v654 = vsel %vm645, 1, 0
      %vm655 = vcmp.eq.s32.totalorder %v653, 1
      %vm656 = vcmp.eq.s32.totalorder %v654, 1
      %v657 = vsel %vm655, 0.0, %v652
      %v658 = vsel %vm656, 0.0, %v651
      %vm659 = vcmp.ge.s32.totalorder %v385, 224
      %vm660 = vcmp.ge.s32.totalorder %v386, 224
      %661 = vrot.lane.b32.xlu0 %v642, 96
      %v662 = vpop.permute.xlu0 %661
      %663 = vrot.lane.b32.xlu0 %v643, 96
      %v664 = vpop.permute.xlu0 %663
      %vm665 = vcmp.lt.s32.totalorder %v337, 96
      %v666 = vsel %vm665, %v662, %v664
      %v667 = vsel %vm665, %v664, %v662
      %v668 = vsel %vm659, 1, 0
      %v669 = vsel %vm660, 1, 0
      %vm670 = vcmp.eq.s32.totalorder %v668, 1
      %vm671 = vcmp.eq.s32.totalorder %v669, 1
      %v672 = vsel %vm670, 0.0, %v666
      %v673 = vsel %vm671, 0.0, %v667
      %v674 = vld [vmem:[%s5] sm:$0xff]
      %v675 = vld [vmem:[%s6] sm:$0xff]
      %677 = vset.pattern.permute.xlu0 0
      %678 = vperm.xlu0 %677, %v675
      %v679 = vpop.permute.xlu0 %678
      %v682 = vsel %vm551, %v674, 0
      %684 = vmatprep.subr.mxu0 %v658
      %685 = vmatpush1.msra.mxu0 %v657
      %686 = vmatprep.subr.mxu0 %v643
      %687 = vmatpush1.msra.mxu0 %v642
      %688 = vmatprep.subr.mxu0 %v673
      %689 = vmatpush1.msra.mxu0 %v672
      %690 = vmatprep.subr.mxu0 0.0
      %691 = vmatpush1.msra.mxu0 0.0
      %692 = vmatprep.subr.mxu0 0.0
      %693 = vmatpush1.msra.mxu0 0.0
      %694 = vmatprep.subr.mxu0 0.0
      %695 = vmatpush1.msra.mxu0 0.0
      %696 = vmatprep.subr.mxu0 0.0
      %697 = vmatpush1.msra.mxu0 0.0
      %698 = vmatprep.subr.mxu0 0.0
      %699 = vmatpush1.msra.mxu0 0.0
      %700 = vmatprep.subr.mxu0 0.0
      %701 = vmatpush1.msra.mxu0 0.0
      %702 = vmatprep.subr.mxu0 0.0
      %703 = vmatpush1.msra.mxu0 0.0
      %704 = vmatprep.subr.mxu0 0.0
      %705 = vmatpush1.msra.mxu0 0.0
      %706 = vmatprep.subr.mxu0 0.0
      %707 = vmatpush1.msra.mxu0 0.0
      %708 = vmatprep.subr.mxu0 0.0
      %709 = vmatpush1.msra.mxu0 0.0
      %710 = vmatprep.subr.mxu0 0.0
      %711 = vmatpush1.msra.mxu0 0.0
      %712 = vmatprep.subr.mxu0 0.0
      %713 = vmatpush1.msra.mxu0 0.0
      %714 = vmatprep.subr.mxu0 0.0
      %715 = vmatpush1.msra.mxu0 0.0
      %716 = vmatprep.subr.mxu0 0.0
      %717 = vmatpush1.msra.mxu0 0.0
      %718 = vmatprep.subr.mxu0 0.0
      %719 = vmatpush1.msra.mxu0 0.0
      %720 = vmatprep.subr.mxu0 0.0
      %721 = vmatpush1.msra.mxu0 0.0
      %722 = vmatprep.subr.mxu0 0.0
      %723 = vmatpush1.msra.mxu0 0.0
      %724 = vmatprep.subr.mxu0 0.0
      %725 = vmatpush1.msra.mxu0 0.0
      %726 = vmatprep.subr.mxu0 0.0
      %727 = vmatpush1.msra.mxu0 0.0
      %728 = vmatprep.subr.mxu0 0.0
      %729 = vmatpush1.msra.mxu0 0.0
      %730 = vmatprep.subr.mxu0 0.0
      %731 = vmatpush1.msra.mxu0 0.0
      %732 = vmatprep.subr.mxu0 0.0
      %733 = vmatpush1.msra.mxu0 0.0
      %734 = vmatprep.subr.mxu0 0.0
      %735 = vmatpush1.msra.mxu0 0.0
      %736 = vmatprep.subr.mxu0 0.0
      %737 = vmatpush1.msra.mxu0 0.0
      %738 = vmatprep.subr.mxu0 0.0
      %739 = vmatpush1.msra.mxu0 0.0
      %740 = vmatprep.subr.mxu0 0.0
      %741 = vmatpush1.msra.mxu0 0.0
      %742 = vmatprep.subr.mxu0 0.0
      %743 = vmatpush1.msra.mxu0 0.0
      %744 = vmatprep.subr.mxu0 0.0
      %745 = vmatpush1.msra.mxu0 0.0
      %746 = vmatprep.subr.mxu0 0.0
      %747 = vmatpush1.msra.mxu0 0.0
      %748 = vmatprep.mubr.f32.mxu0 0.0
      %749 = vmatmul.mubr.f32.gmra.mrb[0].mxu0 %v682
      %v750 = vpop.f32.mrb[0].mxu0
      %v751 = vadd.f32 %v679, %v750
      %v752 = vpop.f32.mrb[0].mxu0
      %v753 = vadd.f32 %v679, %v752
      %754 = vdwg.mxu0
      %vm755 = vcmp.lt.s32.totalorder %v361, 2
      %vm756 = vcmp.lt.s32.totalorder %v362, 2
      %757 = vrot.lane.b32.xlu0 %v751, 2
      %v758 = vpop.permute.xlu0 %757
      %759 = vrot.lane.b32.xlu0 %v753, 2
      %v760 = vpop.permute.xlu0 %759
      %vm761 = vcmp.lt.s32.totalorder %v337, 2
      %v762 = vsel %vm761, %v758, %v760
      %v763 = vsel %vm761, %v760, %v758
      %v764 = vsel %vm755, 1, 0
      %v765 = vsel %vm756, 1, 0
      %vm766 = vcmp.eq.s32.totalorder %v764, 1
      %vm767 = vcmp.eq.s32.totalorder %v765, 1
      %v768 = vsel %vm766, 0.0, %v763
      %v769 = vsel %vm767, 0.0, %v762
      %vm770 = vcmp.ge.s32.totalorder %v361, 14
      %vm771 = vcmp.ge.s32.totalorder %v362, 14
      %772 = vrot.lane.b32.xlu0 %v751, 126
      %v773 = vpop.permute.xlu0 %772
      %774 = vrot.lane.b32.xlu0 %v753, 126
      %v775 = vpop.permute.xlu0 %774
      %vm776 = vcmp.lt.s32.totalorder %v337, 126
      %v777 = vsel %vm776, %v773, %v775
      %v778 = vsel %vm776, %v775, %v773
      %v779 = vsel %vm770, 1, 0
      %v780 = vsel %vm771, 1, 0
      %vm781 = vcmp.eq.s32.totalorder %v779, 1
      %vm782 = vcmp.eq.s32.totalorder %v780, 1
      %v783 = vsel %vm781, 0.0, %v777
      %v784 = vsel %vm782, 0.0, %v778
      %v785 = vld [vmem:[%s7] sm:$0xff]
      %v786 = vld [vmem:[%s8] sm:$0xff]
      %788 = vset.pattern.permute.xlu0 0
      %789 = vperm.xlu0 %788, %v786
      %v790 = vpop.permute.xlu0 %789
      %v793 = vsel %vm551, %v785, 0
      %795 = vmatprep.subr.mxu0 %v769
      %796 = vmatpush1.msra.mxu0 %v768
      %797 = vmatprep.subr.mxu0 %v753
      %798 = vmatpush1.msra.mxu0 %v751
      %799 = vmatprep.subr.mxu0 %v784
      %800 = vmatpush1.msra.mxu0 %v783
      %801 = vmatprep.subr.mxu0 0.0
      %802 = vmatpush1.msra.mxu0 0.0
      %803 = vmatprep.subr.mxu0 0.0
      %804 = vmatpush1.msra.mxu0 0.0
      %805 = vmatprep.subr.mxu0 0.0
      %806 = vmatpush1.msra.mxu0 0.0
      %807 = vmatprep.subr.mxu0 0.0
      %808 = vmatpush1.msra.mxu0 0.0
      %809 = vmatprep.subr.mxu0 0.0
      %810 = vmatpush1.msra.mxu0 0.0
      %811 = vmatprep.subr.mxu0 0.0
      %812 = vmatpush1.msra.mxu0 0.0
      %813 = vmatprep.subr.mxu0 0.0
      %814 = vmatpush1.msra.mxu0 0.0
      %815 = vmatprep.subr.mxu0 0.0
      %816 = vmatpush1.msra.mxu0 0.0
      %817 = vmatprep.subr.mxu0 0.0
      %818 = vmatpush1.msra.mxu0 0.0
      %819 = vmatprep.subr.mxu0 0.0
      %820 = vmatpush1.msra.mxu0 0.0
      %821 = vmatprep.subr.mxu0 0.0
      %822 = vmatpush1.msra.mxu0 0.0
      %823 = vmatprep.subr.mxu0 0.0
      %824 = vmatpush1.msra.mxu0 0.0
      %825 = vmatprep.subr.mxu0 0.0
      %826 = vmatpush1.msra.mxu0 0.0
      %827 = vmatprep.subr.mxu0 0.0
      %828 = vmatpush1.msra.mxu0 0.0
      %829 = vmatprep.subr.mxu0 0.0
      %830 = vmatpush1.msra.mxu0 0.0
      %831 = vmatprep.subr.mxu0 0.0
      %832 = vmatpush1.msra.mxu0 0.0
      %833 = vmatprep.subr.mxu0 0.0
      %834 = vmatpush1.msra.mxu0 0.0
      %835 = vmatprep.subr.mxu0 0.0
      %836 = vmatpush1.msra.mxu0 0.0
      %837 = vmatprep.subr.mxu0 0.0
      %838 = vmatpush1.msra.mxu0 0.0
      %839 = vmatprep.subr.mxu0 0.0
      %840 = vmatpush1.msra.mxu0 0.0
      %841 = vmatprep.subr.mxu0 0.0
      %842 = vmatpush1.msra.mxu0 0.0
      %843 = vmatprep.subr.mxu0 0.0
      %844 = vmatpush1.msra.mxu0 0.0
      %845 = vmatprep.subr.mxu0 0.0
      %846 = vmatpush1.msra.mxu0 0.0
      %847 = vmatprep.subr.mxu0 0.0
      %848 = vmatpush1.msra.mxu0 0.0
      %849 = vmatprep.subr.mxu0 0.0
      %850 = vmatpush1.msra.mxu0 0.0
      %851 = vmatprep.subr.mxu0 0.0
      %852 = vmatpush1.msra.mxu0 0.0
      %853 = vmatprep.subr.mxu0 0.0
      %854 = vmatpush1.msra.mxu0 0.0
      %855 = vmatprep.subr.mxu0 0.0
      %856 = vmatpush1.msra.mxu0 0.0
      %857 = vmatprep.subr.mxu0 0.0
      %858 = vmatpush1.msra.mxu0 0.0
      %859 = vmatprep.mubr.f32.mxu0 0.0
      %860 = vmatmul.mubr.f32.gmra.mrb[0].mxu0 %v793
      %v861 = vpop.f32.mrb[0].mxu0
      %v862 = vadd.f32 %v790, %v861
      %v863 = vpop.f32.mrb[0].mxu0
      %v864 = vadd.f32 %v790, %v863
      %865 = vdwg.mxu0
      %v866 = vmax.f32 %v862, 0.0
      %v867 = vmax.f32 %v864, 0.0
      %868 = vst [vmem:[%s334] sm:$0xff] %v866
      %869 = vst [vmem:[%s334 + $0x8] sm:$0xff] %v867
      %s870 = smul.u32 2, %s20
      %p871 = scmp.lt.s32.totalorder %s870, 3
      %s872 = scalar_select %p871, %s870, 3
      %s873 = smul.addr %s872, 8
      %s874 = scalar_lea.vmem %s9, %s873
      // Predicated region
      $region57: #{convblock_forward.1} parent=55 // pred_check
        %p875 = pneg %p232
      $region58: #{convblock_forward.1} parent=55 // pred_check_branch
        %877 = sbr.rel (%p875) target = $region60
      $region59: #{convblock_forward.1} parent=55 // pred_region
        %s878 = smul.u32 2, %s20
      $region60: #{convblock_forward.1} parent=55 // pred_fallthru
        _
    $region56: #{convblock_forward.1} parent=5 // pred_fallthru
      _
    %p879 = scmp.le.s32.totalorder 2, %s15
    // Predicated region
    $region61: #{convblock_forward.1} parent=5 // pred_check
      %p880 = pneg %p879
    $region62: #{convblock_forward.1} parent=5 // pred_check_branch
      %882 = sbr.rel (%p880) target = $region64
    $region63: #{convblock_forward.1} parent=5 // pred_region
      %s883 = ssub.s32 %s15, 2
      // Predicated region
      $region65: #{convblock_forward.1} parent=63 // pred_check
        %p884 = pneg %p238
      $region66: #{convblock_forward.1} parent=63 // pred_check_branch
        %886 = sbr.rel (%p884) target = $region68
      $region67: #{convblock_forward.1} parent=63 // pred_region
        %s887 = smul.u32 2, %s21
        %p888 = scmp.lt.s32.totalorder %s887, 3
        %s889 = scalar_select %p888, %s887, 3
        %s890 = smul.addr %s889, 8
        %s891 = scalar_lea.vmem %s9, %s890
      $region68: #{convblock_forward.1} parent=63 // pred_fallthru
        _
    $region64: #{convblock_forward.1} parent=5 // pred_fallthru
      _
  $region6: #{convblock_forward.1} parent=0 // loop_footer
    %s19 = sadd.s32 1, %s15
  $region7: #{convblock_forward.1} parent=0 // loop_footer_branch
    %14 = sbr.rel target = $region3
  $region8: #{convblock_forward.1} parent=0 // loop_exit
    _

</llo_original>
